<compile_context>
chip_gen: v7x
topology: tpu7x:2x2x1
jax: 0.10.0
libtpu: 0.0.40
codegen_flags: <defaults>
</compile_context>

<pallas_src>
import numpy as np
import jax
import jax.numpy as jnp
from jax import lax
from jax.experimental import pallas as pl
from jax.experimental.pallas import tpu as pltpu


def _round_up(x, m):
    return ((x + m - 1) // m) * m


def _make_cb_loss_kernel(n_rows, tn, needs_row_mask):
    """Per-tile partial sum of class-balanced softmax-BCE.

    n_rows / tn are baked compile-time constants; needs_row_mask toggles the
    ragged-last-tile row mask at trace time (zero cost when N % tn == 0).
    """

    def kernel(logits_ref, ids_ref, sw_ref, out_ref):
        x = logits_ref[...].astype(jnp.float32)        # (tn, C) in-kernel cast
        ids = ids_ref[...]                             # (tn, 1) int32 true-class ids
        sw = sw_ref[...]                               # (tn, 1) f32 per-sample weights

        if needs_row_mask:
            # Rows >= n_rows in the last tile contain unspecified data: zero the
            # logits (keeps the softmax finite) and the per-sample weight.
            row = pl.program_id(0) * tn + lax.broadcasted_iota(
                jnp.int32, (tn, 1), 0)
            valid = row < n_rows
            x = jnp.where(valid, x, 0.0)
            sw = jnp.where(valid, sw, 0.0)

        # Boolean one-hot mask rebuilt in-register (never read from HBM, never
        # materialized as f32).
        is_true = lax.broadcasted_iota(jnp.int32, x.shape, 1) == ids

        # log-softmax pieces; the shared (x - m) temp feeds both exp and log_p,
        # and 1 - p is computed as (sum_e - e) / sum_e so no p tensor is needed.
        m = jnp.max(x, axis=1, keepdims=True)
        xm = x - m
        e = jnp.exp(xm)
        sum_e = jnp.sum(e, axis=1, keepdims=True)
        log_sum_e = jnp.log(sum_e)
        log_p = jnp.maximum(xm - log_sum_e, -100.0)                    # torch clamp
        log_1mp = jnp.maximum(jnp.log(sum_e - e) - log_sum_e, -100.0)  # torch clamp

        weighted = sw * jnp.where(is_true, log_p, log_1mp)             # (tn, C)

        # Per-tile scalar partial (negation folded here; normalization in the
        # wrapper).  NOTE: the row reduction could be offloaded to the idle MXU
        # via ones(1,tn) @ weighted, but the full reduce keeps lowering simple.
        out_ref[...] = (-jnp.sum(weighted)).reshape(1, 1, 1)

    return kernel


def cb_loss_forward(logits, labels_one_hot, samples_per_cls, no_of_classes,
                    beta=0.9999, label_ids=None, block_rows=None):
    """Class-balanced softmax-BCE loss (cb_loss, loss_type='softmax').

    logits: (N, C) any float dtype.  labels_one_hot: (N, C) one-hot (only used
    if label_ids is None).  label_ids: optional (N,) int labels — preferred,
    avoids an extra (N, C) HBM pass.  Returns scalar f32 mean loss.
    """
    N, C = logits.shape

    # --- host-side class-balance weights (mirrors the numpy code in the module) ---
    effective_num = 1.0 - np.power(beta, np.asarray(samples_per_cls, dtype=np.float64))
    weights = (1.0 - beta) / effective_num
    weights = weights / np.sum(weights) * no_of_classes
    w = jnp.asarray(weights, dtype=jnp.float32)               # (C,)

    if label_ids is None:
        # NOTE: this reads the full (N, C) one-hot from HBM; pass label_ids to
        # skip it.  An all-zero label row maps to class 0 here (the reference
        # would give that row zero weight/loss).
        label_ids = jnp.argmax(labels_one_hot, axis=1)
    ids_flat = label_ids.astype(jnp.int32)

    # Per-sample class-balance weight gathered in the wrapper: (N,) f32 only.
    sample_w = jnp.take(w, ids_flat, axis=0).astype(jnp.float32).reshape(N, 1)
    ids = ids_flat.reshape(N, 1)

    # --- row-tile size from a VMEM budget: 2x double-buffered logits tile plus
    # ~5 live (tn, C) f32 intermediates must fit comfortably under the limit ---
    if block_rows is None:
        bytes_per_row = C * (2 * logits.dtype.itemsize + 5 * 4) + 16
        block_rows = max(8, min(1024, (24 * 1024 * 1024) // bytes_per_row))
    tn = _round_up(min(int(block_rows), N), 8)
    n_tiles = -(-N // tn)
    needs_row_mask = (N % tn) != 0

    kernel = _make_cb_loss_kernel(N, tn, needs_row_mask)

    partials = pl.pallas_call(
        kernel,
        out_shape=jax.ShapeDtypeStruct((n_tiles, 1, 1), jnp.float32),
        grid_spec=pltpu.PrefetchScalarGridSpec(
            num_scalar_prefetch=0,
            grid=(n_tiles,),
            in_specs=[
                pl.BlockSpec((tn, C), lambda i: (i, 0)),   # logits tile (native dtype)
                pl.BlockSpec((tn, 1), lambda i: (i, 0)),   # true-class ids
                pl.BlockSpec((tn, 1), lambda i: (i, 0)),   # per-sample weights
            ],
            out_specs=pl.BlockSpec((1, 1, 1), lambda i: (i, 0, 0)),
        ),
        compiler_params=pltpu.CompilerParams(
            dimension_semantics=("parallel",),       # tiles independent -> megacore/v7x
            vmem_limit_bytes=48 * 1024 * 1024,       # fits v5e/v6e (128 MiB) and v7x (64 MiB)
        ),
    )(logits, ids, sample_w)

    # Tiny (n_tiles,) reduction + mean normalization outside the kernel.
    return jnp.sum(partials) * (1.0 / float(N * C))


def cb_loss_reference(logits, labels_one_hot, samples_per_cls, no_of_classes,
                      beta=0.9999):
    """Pure-JAX reference mirroring the PyTorch module (loss_type='softmax')."""
    effective_num = 1.0 - np.power(beta, np.asarray(samples_per_cls, dtype=np.float64))
    weights = (1.0 - beta) / effective_num
    weights = weights / np.sum(weights) * no_of_classes
    w = jnp.asarray(weights, dtype=jnp.float32)[None, :]
    labels = labels_one_hot.astype(jnp.float32)
    sample_w = jnp.sum(w * labels, axis=1, keepdims=True)
    p = jax.nn.softmax(logits.astype(jnp.float32), axis=1)
    log_p = jnp.maximum(jnp.log(p), -100.0)          # torch BCE clamps log at -100
    log_1mp = jnp.maximum(jnp.log(1.0 - p), -100.0)
    loss = -sample_w * (labels * log_p + (1.0 - labels) * log_1mp)
    return jnp.mean(loss)


if __name__ == "__main__":
    key = jax.random.PRNGKey(0)
    N, C = 20, 16                      # N % tn != 0 -> exercises the ragged-tile mask
    k1, k2 = jax.random.split(key)
    logits = jax.random.normal(k1, (N, C), dtype=jnp.float32)
    label_ids = jax.random.randint(k2, (N,), 0, C)
    labels_one_hot = jax.nn.one_hot(label_ids, C, dtype=jnp.float32)
    # deterministic synthetic per-class sample counts
    samples_per_cls = (np.arange(C) * 7 + 5).astype(np.float64)

    # block_rows=8 -> 3 parallel tiles at this toy batch size (exercises the
    # per-tile partial outputs + row mask); real workloads use the auto tn.
    out = cb_loss_forward(logits, labels_one_hot, samples_per_cls, C,
                          label_ids=label_ids, block_rows=8)
    out = jax.block_until_ready(out)

    ref = cb_loss_reference(logits, labels_one_hot, samples_per_cls, C)
    assert jnp.allclose(out, ref, rtol=1e-5, atol=1e-5), (out, ref)
    print("KERNEL_OK")
</pallas_src>

<mosaic_0001>
module attributes {stable_mosaic.version = 11 : i64} {
  func.func @kernel(%arg0: i32, %arg1: memref<8x16xf32, #tpu.memory_space<vmem>>, %arg2: memref<8x1xi32, #tpu.memory_space<vmem>>, %arg3: memref<8x1xf32, #tpu.memory_space<vmem>>, %arg4: memref<1x1x1xf32, #tpu.memory_space<vmem>>) attributes {dimension_semantics = [#tpu.dimension_semantics<parallel>], iteration_bounds = array<i64: 3>, scalar_prefetch = 0 : i64, scratch_operands = 0 : i64, tpu.core_type = #tpu.core_type<tc>, window_params = [{transform_indices = @transform_0, window_bounds = array<i64: 8, 16>}, {transform_indices = @transform_1, window_bounds = array<i64: 8, 1>}, {transform_indices = @transform_2, window_bounds = array<i64: 8, 1>}, {transform_indices = @transform_3, window_bounds = array<i64: 1, 1, 1>}]} {
    %c0 = arith.constant 0 : index
    %c0_0 = arith.constant 0 : index
    %0 = vector.load %arg1[%c0, %c0_0] : memref<8x16xf32, #tpu.memory_space<vmem>>, vector<8x16xf32>
    %c0_1 = arith.constant 0 : index
    %c0_2 = arith.constant 0 : index
    %1 = vector.load %arg2[%c0_1, %c0_2] : memref<8x1xi32, #tpu.memory_space<vmem>>, vector<8x1xi32>
    %c0_3 = arith.constant 0 : index
    %c0_4 = arith.constant 0 : index
    %2 = vector.load %arg3[%c0_3, %c0_4] : memref<8x1xf32, #tpu.memory_space<vmem>>, vector<8x1xf32>
    %c8_i32 = arith.constant 8 : i32
    %3 = arith.muli %arg0, %c8_i32 : i32
    %4 = tpu.iota {dimensions = array<i32: 0>} : vector<8x1xi32>
    %5 = vector.broadcast %3 : i32 to vector<8x1xi32>
    %6 = arith.addi %5, %4 : vector<8x1xi32>
    %c20_i32 = arith.constant 20 : i32
    %7 = vector.broadcast %c20_i32 : i32 to vector<8x1xi32>
    %8 = arith.cmpi slt, %6, %7 : vector<8x1xi32>
    %cst = arith.constant 0.000000e+00 : f32
    %9 = vector.shape_cast %8 : vector<8x1xi1> to vector<8x1xi1>
    %10 = vector.broadcast %9 : vector<8x1xi1> to vector<8x16xi1>
    %11 = vector.broadcast %cst : f32 to vector<8x16xf32>
    %12 = arith.select %10, %0, %11 : vector<8x16xi1>, vector<8x16xf32>
    %cst_5 = arith.constant 0.000000e+00 : f32
    %13 = vector.broadcast %cst_5 : f32 to vector<8x1xf32>
    %14 = arith.select %8, %2, %13 : vector<8x1xi1>, vector<8x1xf32>
    %15 = tpu.iota {dimensions = array<i32: 1>} : vector<8x16xi32>
    %16 = vector.broadcast %1 : vector<8x1xi32> to vector<8x16xi32>
    %17 = arith.cmpi eq, %15, %16 : vector<8x16xi32>
    %cst_6 = arith.constant dense<0xFF800000> : vector<8xf32>
    %18 = vector.multi_reduction <maximumf>, %12, %cst_6 [1] : vector<8x16xf32> to vector<8xf32>
    %19 = vector.shape_cast %18 : vector<8xf32> to vector<8x1xf32>
    %20 = vector.broadcast %19 : vector<8x1xf32> to vector<8x16xf32>
    %21 = arith.subf %12, %20 : vector<8x16xf32>
    %22 = math.exp %21 : vector<8x16xf32>
    %cst_7 = arith.constant dense<0.000000e+00> : vector<8xf32>
    %23 = vector.multi_reduction <add>, %22, %cst_7 [1] : vector<8x16xf32> to vector<8xf32>
    %24 = vector.shape_cast %23 : vector<8xf32> to vector<8x1xf32>
    %25 = math.log %24 : vector<8x1xf32>
    %26 = vector.broadcast %25 : vector<8x1xf32> to vector<8x16xf32>
    %27 = arith.subf %21, %26 : vector<8x16xf32>
    %cst_8 = arith.constant -1.000000e+02 : f32
    %28 = vector.broadcast %cst_8 : f32 to vector<8x16xf32>
    %29 = arith.maximumf %27, %28 : vector<8x16xf32>
    %30 = vector.broadcast %24 : vector<8x1xf32> to vector<8x16xf32>
    %31 = arith.subf %30, %22 : vector<8x16xf32>
    %32 = math.log %31 : vector<8x16xf32>
    %33 = vector.broadcast %25 : vector<8x1xf32> to vector<8x16xf32>
    %34 = arith.subf %32, %33 : vector<8x16xf32>
    %cst_9 = arith.constant -1.000000e+02 : f32
    %35 = vector.broadcast %cst_9 : f32 to vector<8x16xf32>
    %36 = arith.maximumf %34, %35 : vector<8x16xf32>
    %37 = arith.select %17, %29, %36 : vector<8x16xi1>, vector<8x16xf32>
    %38 = vector.broadcast %14 : vector<8x1xf32> to vector<8x16xf32>
    %39 = arith.mulf %38, %37 : vector<8x16xf32>
    %40 = vector.shape_cast %39 : vector<8x16xf32> to vector<1x8x16xf32>
    %cst_10 = arith.constant dense<0.000000e+00> : vector<1xf32>
    %41 = vector.multi_reduction <add>, %40, %cst_10 [1, 2] : vector<1x8x16xf32> to vector<1xf32>
    %42 = vector.shape_cast %41 : vector<1xf32> to vector<1x1x1xf32>
    %43 = vector.extract %42[0, 0, 0] : f32 from vector<1x1x1xf32>
    %cst_11 = arith.constant 0.000000e+00 : f32
    %44 = arith.subf %cst_11, %43 : f32
    %45 = vector.broadcast %44 : f32 to vector<1x1x1xf32>
    %c0_12 = arith.constant 0 : index
    %c0_13 = arith.constant 0 : index
    %c0_14 = arith.constant 0 : index
    %46 = vector.load %arg4[%c0_12, %c0_13, %c0_14] : memref<1x1x1xf32, #tpu.memory_space<vmem>>, vector<1x1x1xf32>
    tpu.vector_store %arg4[%c0_12, %c0_13, %c0_14], %45 {strides = array<i32>} : memref<1x1x1xf32, #tpu.memory_space<vmem>>, vector<1x1x1xf32>,
    return
  }
  func.func @transform_0(%arg0: i32) -> (i32, i32) {
    %c0_i32 = arith.constant 0 : i32
    %c0_i32_0 = arith.constant 0 : i32
    return %arg0, %c0_i32 : i32, i32
  }
  func.func @transform_1(%arg0: i32) -> (i32, i32) {
    %c0_i32 = arith.constant 0 : i32
    %c0_i32_0 = arith.constant 0 : i32
    return %arg0, %c0_i32 : i32, i32
  }
  func.func @transform_2(%arg0: i32) -> (i32, i32) {
    %c0_i32 = arith.constant 0 : i32
    %c0_i32_0 = arith.constant 0 : i32
    return %arg0, %c0_i32 : i32, i32
  }
  func.func @transform_3(%arg0: i32) -> (i32, i32, i32) {
    %c0_i32 = arith.constant 0 : i32
    %c0_i32_0 = arith.constant 0 : i32
    %c0_i32_1 = arith.constant 0 : i32
    return %arg0, %c0_i32, %c0_i32_0 : i32, i32, i32
  }
}

</mosaic_0001>

<llo_original>
// kernel: tpu_custom_call.1
$region0: #{tpu_custom_call.1}
  #allocation0 [shape = 'u32[]', space=smem, size = 0x4, offset = 0x4, fixed_abs, tag = 'smem constant byte address 0x4 - core index']
  #allocation1 [shape = 'u32[144,128]{1,0:T(1,128)}', space=vmem, size = 0x12000, scoped, tag = 'internal scratch']
  %s0 = inlined_call_operand.vmem [shape: f32[20,16], index: 0, kind: input, shape index: {}]
  %s1 = inlined_call_operand.vmem [shape: s32[20,1], index: 1, kind: input, shape index: {}]
  %s2 = inlined_call_operand.vmem [shape: f32[20,1], index: 2, kind: input, shape index: {}]
  %s3 = inlined_call_operand.vmem [shape: f32[3,1,1], index: 3, kind: output, shape index: {}]
  %s4 = sld [smem:[#allocation0]]
  $region45: #{tpu_custom_call.1} parent=0
    _
  %s6 = ssub.s32 1, %s4
  %s7 = scalar_select 0, %s6, %s4
  loop: start=0, step=1, limit=5
  $region2: #{tpu_custom_call.1} parent=0 // loop_pre_header
    _
  $region3: #{tpu_custom_call.1} parent=0 // loop_header
    %s9 = sphi 0, %s13
    %p10 = scmp.ge.s32.totalorder %s9, 5
    %s19 = sphi 0, %s21
    %s22 = sphi 0, %s19
    %s23 = sphi 0, %s22
    %s39 = sphi 0, %s23
    %s45 = sphi 0, %s47
    %s48 = sphi 0, %s45
    %s49 = sphi 0, %s48
    %s65 = sphi 0, %s49
    %s71 = sphi 0, %s73
    %s74 = sphi 0, %s71
    %s75 = sphi 0, %s74
    %s91 = sphi 0, %s75
    %s97 = sphi 0, %s99
    %s100 = sphi 0, %s97
    %s101 = sphi 0, %s100
    %s117 = sphi 0, %s101
  $region4: #{tpu_custom_call.1} parent=0 // loop_header_branch
    %12 = sbr.rel (%p10) target = $region8
  $region5: #{tpu_custom_call.1} parent=0 // loop_body
    %s14 = ssub.s32 %s9, 1
    %s15 = ssub.s32 %s9, 2
    %s16 = sadd.s32 %s9, 1
    %s17 = ssub.s32 %s9, %s16
    %p18 = scmp.eq.s32.totalorder %s17, 0
    %s20 = sadd.s32 %s19, 1
    %s21 = scalar_select %p18, %s19, %s20
    %p24 = pneg %p18
    %p25 = scmp.eq.s32.totalorder %s9, 2
    %p26 = por %p24, %p25
    %p27 = scmp.ne.s32.totalorder %s19, %s22
    %p28 = scmp.eq.s32.totalorder %s9, 0
    %p29 = por %p27, %p28
    %p30 = scmp.ne.s32.totalorder %s19, %s22
    %p31 = scmp.eq.s32.totalorder %s14, 2
    %p32 = por %p30, %p31
    %p33 = scmp.ne.s32.totalorder %s22, %s23
    %p34 = scmp.eq.s32.totalorder %s14, 0
    %p35 = por %p33, %p34
    %p36 = scmp.ne.s32.totalorder %s22, %s23
    %p37 = scmp.eq.s32.totalorder %s15, 2
    %p38 = por %p36, %p37
    %p40 = scmp.ne.s32.totalorder %s23, %s39
    %p41 = scmp.eq.s32.totalorder %s15, 0
    %p42 = por %p40, %p41
    %s43 = ssub.s32 %s9, %s16
    %p44 = scmp.eq.s32.totalorder %s43, 0
    %s46 = sadd.s32 %s45, 1
    %s47 = scalar_select %p44, %s45, %s46
    %p50 = pneg %p44
    %p51 = scmp.eq.s32.totalorder %s9, 2
    %p52 = por %p50, %p51
    %p53 = scmp.ne.s32.totalorder %s45, %s48
    %p54 = scmp.eq.s32.totalorder %s9, 0
    %p55 = por %p53, %p54
    %p56 = scmp.ne.s32.totalorder %s45, %s48
    %p57 = scmp.eq.s32.totalorder %s14, 2
    %p58 = por %p56, %p57
    %p59 = scmp.ne.s32.totalorder %s48, %s49
    %p60 = scmp.eq.s32.totalorder %s14, 0
    %p61 = por %p59, %p60
    %p62 = scmp.ne.s32.totalorder %s48, %s49
    %p63 = scmp.eq.s32.totalorder %s15, 2
    %p64 = por %p62, %p63
    %p66 = scmp.ne.s32.totalorder %s49, %s65
    %p67 = scmp.eq.s32.totalorder %s15, 0
    %p68 = por %p66, %p67
    %s69 = ssub.s32 %s9, %s16
    %p70 = scmp.eq.s32.totalorder %s69, 0
    %s72 = sadd.s32 %s71, 1
    %s73 = scalar_select %p70, %s71, %s72
    %p76 = pneg %p70
    %p77 = scmp.eq.s32.totalorder %s9, 2
    %p78 = por %p76, %p77
    %p79 = scmp.ne.s32.totalorder %s71, %s74
    %p80 = scmp.eq.s32.totalorder %s9, 0
    %p81 = por %p79, %p80
    %p82 = scmp.ne.s32.totalorder %s71, %s74
    %p83 = scmp.eq.s32.totalorder %s14, 2
    %p84 = por %p82, %p83
    %p85 = scmp.ne.s32.totalorder %s74, %s75
    %p86 = scmp.eq.s32.totalorder %s14, 0
    %p87 = por %p85, %p86
    %p88 = scmp.ne.s32.totalorder %s74, %s75
    %p89 = scmp.eq.s32.totalorder %s15, 2
    %p90 = por %p88, %p89
    %p92 = scmp.ne.s32.totalorder %s75, %s91
    %p93 = scmp.eq.s32.totalorder %s15, 0
    %p94 = por %p92, %p93
    %s95 = ssub.s32 %s9, %s16
    %p96 = scmp.eq.s32.totalorder %s95, 0
    %s98 = sadd.s32 %s97, 1
    %s99 = scalar_select %p96, %s97, %s98
    %p102 = pneg %p96
    %p103 = scmp.eq.s32.totalorder %s9, 2
    %p104 = por %p102, %p103
    %p105 = scmp.ne.s32.totalorder %s97, %s100
    %p106 = scmp.eq.s32.totalorder %s9, 0
    %p107 = por %p105, %p106
    %p108 = scmp.ne.s32.totalorder %s97, %s100
    %p109 = scmp.eq.s32.totalorder %s14, 2
    %p110 = por %p108, %p109
    %p111 = scmp.ne.s32.totalorder %s100, %s101
    %p112 = scmp.eq.s32.totalorder %s14, 0
    %p113 = por %p111, %p112
    %p114 = scmp.ne.s32.totalorder %s100, %s101
    %p115 = scmp.eq.s32.totalorder %s15, 2
    %p116 = por %p114, %p115
    %p118 = scmp.ne.s32.totalorder %s101, %s117
    %p119 = scmp.eq.s32.totalorder %s15, 0
    %p120 = por %p118, %p119
    %p121 = scmp.le.s32.totalorder 1, %s9
    %p122 = scmp.lt.s32.totalorder %s9, 4
    %p123 = pnand %p121, %p122
    %p124 = pneg %p123
    // Predicated region
    $region9: #{tpu_custom_call.1} parent=5 // pred_check
      _
    $region10: #{tpu_custom_call.1} parent=5 // pred_check_branch
      %126 = sbr.rel (%p123) target = $region12
    $region11: #{tpu_custom_call.1} parent=5 // pred_region
      %s127 = ssub.s32 %s9, 1
    $region12: #{tpu_custom_call.1} parent=5 // pred_fallthru
      _
    %p128 = scmp.lt.s32.totalorder %s9, 3
    // Predicated region
    $region13: #{tpu_custom_call.1} parent=5 // pred_check
      %p129 = pneg %p128
    $region14: #{tpu_custom_call.1} parent=5 // pred_check_branch
      %131 = sbr.rel (%p129) target = $region16
    $region15: #{tpu_custom_call.1} parent=5 // pred_region
      // Predicated region
      $region17: #{tpu_custom_call.1} parent=15 // pred_check
        %p132 = pneg %p29
      $region18: #{tpu_custom_call.1} parent=15 // pred_check_branch
        %134 = sbr.rel (%p132) target = $region20
      $region19: #{tpu_custom_call.1} parent=15 // pred_region
        %p135 = scmp.lt.s32.totalorder %s9, 2
        %s136 = scalar_select %p135, %s9, 2
        %s137 = smul.addr %s136, 8
        %s138 = scalar_lea.vmem %s0, %s137
      $region20: #{tpu_custom_call.1} parent=15 // pred_fallthru
        _
      // Predicated region
      $region21: #{tpu_custom_call.1} parent=15 // pred_check
        %p139 = pneg %p55
      $region22: #{tpu_custom_call.1} parent=15 // pred_check_branch
        %141 = sbr.rel (%p139) target = $region24
      $region23: #{tpu_custom_call.1} parent=15 // pred_region
        %p142 = scmp.lt.s32.totalorder %s9, 2
        %s143 = scalar_select %p142, %s9, 2
        %s144 = smul.addr %s143, 8
        %s145 = scalar_lea.vmem %s1, %s144
      $region24: #{tpu_custom_call.1} parent=15 // pred_fallthru
        _
      // Predicated region
      $region25: #{tpu_custom_call.1} parent=15 // pred_check
        %p146 = pneg %p81
      $region26: #{tpu_custom_call.1} parent=15 // pred_check_branch
        %148 = sbr.rel (%p146) target = $region28
      $region27: #{tpu_custom_call.1} parent=15 // pred_region
        %p149 = scmp.lt.s32.totalorder %s9, 2
        %s150 = scalar_select %p149, %s9, 2
        %s151 = smul.addr %s150, 8
        %s152 = scalar_lea.vmem %s2, %s151
      $region28: #{tpu_custom_call.1} parent=15 // pred_fallthru
        _
    $region16: #{tpu_custom_call.1} parent=5 // pred_fallthru
      _
    %p153 = scmp.le.s32.totalorder 1, %s9
    %p154 = scmp.lt.s32.totalorder %s9, 4
    %p155 = pnand %p153, %p154
    %p156 = pneg %p155
    // Predicated region
    $region29: #{tpu_custom_call.1} parent=5 // pred_check
      _
    $region30: #{tpu_custom_call.1} parent=5 // pred_check_branch
      %158 = sbr.rel (%p155) target = $region32
    $region31: #{tpu_custom_call.1} parent=5 // pred_region
      %s159 = ssub.s32 %s9, 1
      %p160 = scmp.lt.s32.totalorder %s14, 2
      %s161 = scalar_select %p160, %s14, 2
      %s162 = smul.addr %s161, 8
      %s163 = scalar_lea.vmem %s0, %s162
      %p164 = pneg %p35
      %p165 = pneg %p32
      %p166 = scmp.lt.s32.totalorder %s14, 2
      %s167 = scalar_select %p166, %s14, 2
      %s168 = smul.addr %s167, 8
      %s169 = scalar_lea.vmem %s1, %s168
      %p170 = pneg %p61
      %p171 = pneg %p58
      %p172 = scmp.lt.s32.totalorder %s14, 2
      %s173 = scalar_select %p172, %s14, 2
      %s174 = smul.addr %s173, 8
      %s175 = scalar_lea.vmem %s2, %s174
      %p176 = pneg %p87
      %p177 = pneg %p84
      %p178 = pneg %p113
      %p179 = pneg %p110
      %p180 = scmp.lt.s32.totalorder %s14, 2
      %s181 = scalar_select %p180, %s14, 2
      %s182 = scalar_lea.vmem %s3, %s181
      %p183 = scmp.lt.s32.totalorder %s14, 2
      %s184 = scalar_select %p183, %s14, 2
      %s185 = smul.addr %s184, 8
      %s186 = scalar_lea.vmem %s0, %s185
      %p187 = scmp.lt.s32.totalorder %s14, 2
      %s188 = scalar_select %p187, %s14, 2
      %s189 = smul.addr %s188, 8
      %s190 = scalar_lea.vmem %s1, %s189
      %p191 = scmp.lt.s32.totalorder %s14, 2
      %s192 = scalar_select %p191, %s14, 2
      %s193 = smul.addr %s192, 8
      %s194 = scalar_lea.vmem %s2, %s193
      %p195 = scmp.lt.s32.totalorder %s14, 2
      %s196 = scalar_select %p195, %s14, 2
      %s197 = scalar_lea.vmem %s3, %s196
      %v198 = vld [vmem:[%s186] sm:$0xff]
      %v199 = vld [vmem:[%s190] sm:$0xff]
      %v200 = vld [vmem:[%s194] sm:$0xff]
      %s201 = smul.u32 %s14, 8
      %v202 = vlaneseq
      %v203 = vshrl.u32 %v202, 7
      %v204 = vstv %s201
      %v205 = vadd.s32 %v204, %v203
      %vm206 = vcmp.lt.s32.totalorder %v205, 20
      %v207 = vsel %vm206, 1, 0
      %vm208 = vcmp.eq.s32.totalorder %v207, 1
      %v209 = vsel %vm208, %v198, 0.0
      %v210 = vsel %vm206, %v200, 0.0
      %v211 = vlaneseq
      %v212 = vand.u32 %v211, 127
      %213 = vset.pattern.permute.xlu0 0
      %214 = vperm.xlu0 %213, %v199
      %v215 = vpop.permute.xlu0 %214
      %vm216 = vcmp.eq.s32.totalorder %v212, %v215
      %vm217 = vcmask 130048
      %v218 = vsel %vm217, %v209, -inf
      %219 = vmax.xlane.f32.xlu0 %v218
      %v220 = vpop.xlane.xlu0 %219
      %v221 = vsub.f32 %v209, %v220
      %v222 = vmul.f32 %v221, 1.442695
      %v223 = vpow.pop %v222
      %v224 = vsel %vm217, %v223, 0.0
      %225 = vadd.xlane.f32.xlu0 %v224
      %v226 = vpop.xlane.xlu0 %225
      %v227 = vlog2.pop %v226
      %v228 = vmul.f32 %v227, 0.6931472
      %v229 = vsub.f32 %v221, %v228
      %v230 = vmax.f32 %v229, -100.0
      %v231 = vsub.f32 %v226, %v223
      %v232 = vlog2.pop %v231
      %v233 = vmul.f32 %v232, 0.6931472
      %v234 = vsub.f32 %v233, %v228
      %v235 = vmax.f32 %v234, -100.0
      %v236 = vsel %vm216, %v230, %v235
      %238 = vset.pattern.permute.xlu0 0
      %239 = vperm.xlu0 %238, %v210
      %v240 = vpop.permute.xlu0 %239
      %v242 = vmul.f32 %v240, %v236
      %v243 = vsel %vm217, %v242, 0.0
      %244 = vadd.xlane.f32.xlu0 %v243
      %v245 = vpop.xlane.xlu0 %244
      %v246 = vrot.slane %v245, 4
      %v247 = vadd.f32 %v245, %v246
      %v248 = vrot.slane %v247, 2
      %v249 = vadd.f32 %v247, %v248
      %v250 = vrot.slane %v249, 1
      %v251 = vadd.f32 %v249, %v250
      %s252 = vtos %v251
      %s253 = ssub.f32 0.0, %s252
      %v254 = vstv %s253
      %vm255 = vcmask 0
      %256 = vst.msk [vmem:[%s197] sm:$0x1] %vm255, %v254
      %p257 = scmp.lt.s32.totalorder %s14, 2
      %s258 = scalar_select %p257, %s14, 2
      %s259 = scalar_lea.vmem %s3, %s258
      // Predicated region
      $region33: #{tpu_custom_call.1} parent=31 // pred_check
        %p260 = pneg %p110
      $region34: #{tpu_custom_call.1} parent=31 // pred_check_branch
        %262 = sbr.rel (%p260) target = $region36
      $region35: #{tpu_custom_call.1} parent=31 // pred_region
        _
      $region36: #{tpu_custom_call.1} parent=31 // pred_fallthru
        _
    $region32: #{tpu_custom_call.1} parent=5 // pred_fallthru
      _
    %p263 = scmp.le.s32.totalorder 2, %s9
    // Predicated region
    $region37: #{tpu_custom_call.1} parent=5 // pred_check
      %p264 = pneg %p263
    $region38: #{tpu_custom_call.1} parent=5 // pred_check_branch
      %266 = sbr.rel (%p264) target = $region40
    $region39: #{tpu_custom_call.1} parent=5 // pred_region
      %s267 = ssub.s32 %s9, 2
      // Predicated region
      $region41: #{tpu_custom_call.1} parent=39 // pred_check
        %p268 = pneg %p116
      $region42: #{tpu_custom_call.1} parent=39 // pred_check_branch
        %270 = sbr.rel (%p268) target = $region44
      $region43: #{tpu_custom_call.1} parent=39 // pred_region
        %p271 = scmp.lt.s32.totalorder %s15, 2
        %s272 = scalar_select %p271, %s15, 2
        %s273 = scalar_lea.vmem %s3, %s272
      $region44: #{tpu_custom_call.1} parent=39 // pred_fallthru
        _
    $region40: #{tpu_custom_call.1} parent=5 // pred_fallthru
      _
  $region6: #{tpu_custom_call.1} parent=0 // loop_footer
    %s13 = sadd.s32 1, %s9
  $region7: #{tpu_custom_call.1} parent=0 // loop_footer_branch
    %8 = sbr.rel target = $region3
  $region8: #{tpu_custom_call.1} parent=0 // loop_exit
    _

</llo_original>
